<compile_context>
chip_gen: v6e
topology: v6e:2x2x1
jax: 0.10.0
libtpu: 0.0.40
codegen_flags: <defaults>
</compile_context>

<pallas_src>
import functools

import jax
import jax.numpy as jnp
from jax.experimental import pallas as pl
from jax.experimental.pallas import tpu as pltpu


# ----------------------------------------------------------------------------
# Fused kernel: rec-stage MLP pair + reparam, then pred-stage MLP pair +
# reparam on the (still-resident) rec_mean, for one tile of TM rows.
# Each stage writes a single lane-dense slab [TM, 3*f_out] = mean|logvar|z.
# ----------------------------------------------------------------------------
def _encoder_zc_kernel(x_ref, eps_rec_ref, eps_pred_ref,
                       w1r_ref, b1r_ref, w2r_ref, b2r_ref,
                       w1p_ref, b1p_ref, w2p_ref, b2p_ref,
                       rec_out_ref, pred_out_ref,
                       *, hidden_dim, rec_blockdiag, pred_blockdiag):
    H = hidden_dim
    L = eps_rec_ref.shape[1]
    P = eps_pred_ref.shape[1]

    def stage(x_bf16, w1_ref, b1_ref, w2_ref, b2_ref, f_out, blockdiag):
        # layer 1: mean|std branches packed along the output dim -> one dot.
        h = jnp.tanh(
            jnp.dot(x_bf16, w1_ref[...], preferred_element_type=jnp.float32)
            + b1_ref[...])                                    # f32 [TM, 2H]
        hb = h.astype(jnp.bfloat16)                           # bf16 MXU operand
        if blockdiag:
            # layer 2 packed as blockdiag(W2_mean, W2_std): one dot, split after.
            ml = (jnp.dot(hb, w2_ref[...], preferred_element_type=jnp.float32)
                  + b2_ref[...])                              # f32 [TM, 2F]
            return ml[:, :f_out], ml[:, f_out:]
        # large-H path: two un-padded dots (no zero MACs / doubled weight DMA).
        mean = (jnp.dot(hb[:, :H], w2_ref[0],
                        preferred_element_type=jnp.float32) + b2_ref[:, :f_out])
        logvar = (jnp.dot(hb[:, H:], w2_ref[1],
                          preferred_element_type=jnp.float32) + b2_ref[:, f_out:])
        return mean, logvar

    x = x_ref[...]                                            # bf16 [TM, L]

    # ---- rec stage -----------------------------------------------------------
    rec_mean, rec_logvar = stage(x, w1r_ref, b1r_ref, w2r_ref, b2r_ref,
                                 L, rec_blockdiag)
    rec_z = (rec_mean
             + jnp.exp(0.5 * rec_logvar) * eps_rec_ref[...].astype(jnp.float32))
    rec_out_ref[...] = jnp.concatenate([rec_mean, rec_logvar, rec_z], axis=1)

    # ---- pred stage on rec_mean (kept on-chip, no HBM round trip) ------------
    pred_mean, pred_logvar = stage(rec_mean.astype(jnp.bfloat16),
                                   w1p_ref, b1p_ref, w2p_ref, b2p_ref,
                                   P, pred_blockdiag)
    pred_z = (pred_mean
              + jnp.exp(0.5 * pred_logvar) * eps_pred_ref[...].astype(jnp.float32))
    pred_out_ref[...] = jnp.concatenate([pred_mean, pred_logvar, pred_z], axis=1)


# ----------------------------------------------------------------------------
# Generation-aware VMEM budget + row-tile heuristic.
# ----------------------------------------------------------------------------
def _vmem_limit_bytes():
    """Scoped-VMEM limit per generation (v7x has only 64 MiB physical)."""
    try:
        cap = int(pltpu.get_tpu_info().vmem_capacity_bytes)
        return (48 << 20) if cap <= (64 << 20) else (64 << 20)
    except Exception:
        return 32 << 20   # conservative default (also covers interpret/CPU)


def _choose_tile_m(M, L, P, H, weight_bytes, vmem_limit):
    """Largest row tile that fits the scoped VMEM budget (including the
    double-buffered weight blocks); keeps >= 2 grid steps when M allows so the
    v7x dual TensorCores can shard the 'parallel' axis and DMA can overlap."""
    # per-row double-buffered streams: bf16 x/eps_rec/eps_pred in, f32 slabs out
    stream = 2 * (2 * L + 2 * L + 2 * P) + 2 * (4 * 3 * L + 4 * 3 * P)
    # live f32 activations (h, hb, layer-2 results), generous single-copy bound
    live = 4 * (4 * H + 8 * L + 8 * P)
    per_row = stream + live
    budget = vmem_limit - 2 * weight_bytes - (2 << 20)
    tm = max(budget // per_row, 16)
    if M >= 64:                      # guarantee >= 2 grid steps (v7x dual TC)
        tm = min(tm, -(-M // 2))
    tm = int(min(tm, 8192, M))
    if tm < M:                       # bf16 inputs pack 16 rows per vreg
        tm = max((tm // 16) * 16, 16)
    return tm


# ----------------------------------------------------------------------------
# Weight packing: layer 1 is always [f_in, 2H] (mean|std concat); layer 2 is
# block-diagonal [2H, 2F] only while both packed dims fit one MXU tile,
# otherwise stacked [2, H, F] and the kernel issues two un-padded dots.
# ----------------------------------------------------------------------------
_MXU_TILE = 256   # v6e/v7x native tile; padding on v5e (128) is harmless


def _pack_stage(p_mean, p_std, blockdiag):
    w1 = jnp.concatenate([p_mean["w1"], p_std["w1"]], axis=1).astype(jnp.bfloat16)
    b1 = jnp.concatenate([p_mean["b1"], p_std["b1"]], axis=1)            # f32
    H, F = p_mean["w2"].shape
    if blockdiag:
        z = jnp.zeros((H, F), jnp.float32)
        w2 = jnp.concatenate(
            [jnp.concatenate([p_mean["w2"], z], axis=1),
             jnp.concatenate([z, p_std["w2"]], axis=1)], axis=0)         # [2H, 2F]
    else:
        w2 = jnp.stack([p_mean["w2"], p_std["w2"]], axis=0)              # [2, H, F]
    w2 = w2.astype(jnp.bfloat16)
    b2 = jnp.concatenate([p_mean["b2"], p_std["b2"]], axis=1)            # f32
    return w1, b1, w2, b2


def _pack_params(params):
    H, L = params["rec_mean"]["w2"].shape
    P = params["pred_mean"]["w2"].shape[1]
    rec_bd = (2 * H <= _MXU_TILE) and (2 * L <= _MXU_TILE)
    pred_bd = (2 * H <= _MXU_TILE) and (2 * P <= _MXU_TILE)
    w1r, b1r, w2r, b2r = _pack_stage(params["rec_mean"], params["rec_std"], rec_bd)
    w1p, b1p, w2p, b2p = _pack_stage(params["pred_mean"], params["pred_std"], pred_bd)
    wp = dict(w1r=w1r, b1r=b1r, w2r=w2r, b2r=b2r,
              w1p=w1p, b1p=b1p, w2p=w2p, b2p=b2p)
    return wp, rec_bd, pred_bd


# ----------------------------------------------------------------------------
# pallas_call wrapper.
# ----------------------------------------------------------------------------
def _fused_encoder_call(x2d, eps_rec, eps_pred, wp, L, P, H, rec_bd, pred_bd):
    M = x2d.shape[0]
    vmem_limit = _vmem_limit_bytes()
    weight_bytes = sum(int(a.size) * a.dtype.itemsize for a in wp.values())
    TM = _choose_tile_m(M, L, P, H, weight_bytes, vmem_limit)
    grid = (pl.cdiv(M, TM),)

    row = lambda i: (i, 0)

    def const_spec(a):   # weights/biases: same block every step -> no re-DMA
        return pl.BlockSpec(a.shape, lambda i, _nd=a.ndim: (0,) * _nd)

    in_specs = [
        pl.BlockSpec((TM, L), row),            # x            (bf16)
        pl.BlockSpec((TM, L), row),            # eps_rec      (bf16)
        pl.BlockSpec((TM, P), row),            # eps_pred     (bf16)
        const_spec(wp["w1r"]), const_spec(wp["b1r"]),
        const_spec(wp["w2r"]), const_spec(wp["b2r"]),
        const_spec(wp["w1p"]), const_spec(wp["b1p"]),
        const_spec(wp["w2p"]), const_spec(wp["b2p"]),
    ]
    out_specs = (pl.BlockSpec((TM, 3 * L), row),
                 pl.BlockSpec((TM, 3 * P), row))
    out_shape = (jax.ShapeDtypeStruct((M, 3 * L), jnp.float32),
                 jax.ShapeDtypeStruct((M, 3 * P), jnp.float32))

    kernel = functools.partial(_encoder_zc_kernel, hidden_dim=H,
                               rec_blockdiag=rec_bd, pred_blockdiag=pred_bd)

    # NOTE: padded tail rows of a partial last tile compute on uninitialized
    # VMEM but are never written back (Pallas clips the output block).
    return pl.pallas_call(
        kernel,
        grid_spec=pltpu.PrefetchScalarGridSpec(
            num_scalar_prefetch=0, grid=grid,
            in_specs=in_specs, out_specs=out_specs),
        out_shape=out_shape,
        compiler_params=pltpu.CompilerParams(
            dimension_semantics=("parallel",),
            vmem_limit_bytes=vmem_limit),
    )(x2d, eps_rec, eps_pred,
      wp["w1r"], wp["b1r"], wp["w2r"], wp["b2r"],
      wp["w1p"], wp["b1p"], wp["w2p"], wp["b2p"])


# ----------------------------------------------------------------------------
# Parameter init (PyTorch nn.Linear-style uniform init), weights stored as
# (in, out) so the kernel does x @ W + b.
# ----------------------------------------------------------------------------
def init_linear(key, f_in, f_out):
    kw, kb = jax.random.split(key)
    bound = 1.0 / float(f_in) ** 0.5
    w = jax.random.uniform(kw, (f_in, f_out), minval=-bound, maxval=bound,
                           dtype=jnp.float32)
    b = jax.random.uniform(kb, (1, f_out), minval=-bound, maxval=bound,
                           dtype=jnp.float32)
    return w, b


def init_mlp(key, f_in, f_out, hidden_dim):
    k1, k2 = jax.random.split(key)
    w1, b1 = init_linear(k1, f_in, hidden_dim)
    w2, b2 = init_linear(k2, hidden_dim, f_out)
    return {"w1": w1, "b1": b1, "w2": w2, "b2": b2}


def init_encoder_zc(key, seq_len, pred_len, hidden_dim):
    ks = jax.random.split(key, 4)
    return {
        "rec_mean":  init_mlp(ks[0], seq_len, seq_len, hidden_dim),
        "rec_std":   init_mlp(ks[1], seq_len, seq_len, hidden_dim),
        "pred_mean": init_mlp(ks[2], seq_len, pred_len, hidden_dim),
        "pred_std":  init_mlp(ks[3], seq_len, pred_len, hidden_dim),
    }


def _sample_eps(key, M, L, P):
    """torch.randn_like equivalents, drawn host-side (bf16 noise is plenty)."""
    kr, kp = jax.random.split(key)
    eps_rec = jax.random.normal(kr, (M, L), dtype=jnp.bfloat16)
    eps_pred = jax.random.normal(kp, (M, P), dtype=jnp.bfloat16)
    return eps_rec, eps_pred


# ----------------------------------------------------------------------------
# Encoder_ZC.forward
# ----------------------------------------------------------------------------
def encoder_zc_forward(x_enc, params, key):
    """x_enc: [B, seq_len, enc_in].  Returns the same permuted-layout tuples as
    the PyTorch module: ([B,C,L] x3), ([B,C,P] x3), with C = enc_in = zc_dim."""
    B, L, C = x_enc.shape
    H = params["rec_mean"]["w1"].shape[1]
    P = params["pred_mean"]["w2"].shape[1]
    M = B * C

    # permute(0,2,1)+flatten, fused with the bf16 downcast into one XLA pass.
    # TODO(synk): fold this pass into the kernel's input DMA (3-D BlockSpec +
    # in-kernel minor-dim transpose, or allow_input_fusion) to remove it fully.
    x2d = jnp.transpose(x_enc, (0, 2, 1)).reshape(M, L).astype(jnp.bfloat16)

    eps_rec, eps_pred = _sample_eps(key, M, L, P)
    wp, rec_bd, pred_bd = _pack_params(params)

    rec_slab, pred_slab = _fused_encoder_call(
        x2d, eps_rec, eps_pred, wp, L, P, H, rec_bd, pred_bd)

    rec = rec_slab.reshape(B, C, 3 * L)
    pred = pred_slab.reshape(B, C, 3 * P)
    # TODO(synk): kl_loss / NPTransitionPrior (jacfwd-based) is not part of
    # forward() and is not implemented here.
    return ((rec[..., :L], rec[..., L:2 * L], rec[..., 2 * L:]),
            (pred[..., :P], pred[..., P:2 * P], pred[..., 2 * P:]))


if __name__ == "__main__":
    # small config: batch=2, enc_in = zc_dim = 4, seq_len=8, pred_len=4, hidden=32
    B, C, L, P, H = 2, 4, 8, 4, 32

    root = jax.random.PRNGKey(0)
    k_param, k_data, k_noise, k_param2, k_noise2 = jax.random.split(root, 5)

    x_enc = jax.random.normal(k_data, (B, L, C), dtype=jnp.float32)
    x2d_f32 = jnp.transpose(x_enc, (0, 2, 1)).reshape(B * C, L)

    def mlp_ref(xin, p):
        return jnp.tanh(xin @ p["w1"] + p["b1"]) @ p["w2"] + p["b2"]

    def run_and_check(params, key, label):
        (rm, rs, rz), (pm, ps, pz) = encoder_zc_forward(x_enc, params, key)
        jax.block_until_ready((rm, rs, rz, pm, ps, pz))

        assert rm.shape == rs.shape == rz.shape == (B, C, L), label
        assert pm.shape == ps.shape == pz.shape == (B, C, P), label

        # pure-JAX f32 reference; kernel matmuls use bf16 operands with f32
        # accumulation, hence the loose tolerance.  eps is reproduced exactly.
        eps_r, eps_p = _sample_eps(key, B * C, L, P)
        ref_rm = mlp_ref(x2d_f32, params["rec_mean"])
        ref_rs = mlp_ref(x2d_f32, params["rec_std"])
        ref_rz = ref_rm + jnp.exp(0.5 * ref_rs) * eps_r.astype(jnp.float32)
        ref_pm = mlp_ref(ref_rm, params["pred_mean"])
        ref_ps = mlp_ref(ref_rm, params["pred_std"])
        ref_pz = ref_pm + jnp.exp(0.5 * ref_ps) * eps_p.astype(jnp.float32)

        pairs = [(rm, ref_rm), (rs, ref_rs), (rz, ref_rz),
                 (pm, ref_pm), (ps, ref_ps), (pz, ref_pz)]
        for got, ref in pairs:
            g = got.reshape(ref.shape)
            assert bool(jnp.all(jnp.isfinite(g))), label
            err = float(jnp.max(jnp.abs(g - ref)))
            assert jnp.allclose(g, ref, atol=3e-2, rtol=3e-2), (label, err)

    # 1) small-hidden config: exercises the block-diagonal layer-2 path
    params = init_encoder_zc(k_param, seq_len=L, pred_len=P, hidden_dim=H)
    run_and_check(params, k_noise, "blockdiag layer-2 path (H=32)")

    # 2) large-hidden config: exercises the split (two un-padded dots) path
    params_big = init_encoder_zc(k_param2, seq_len=L, pred_len=P, hidden_dim=160)
    run_and_check(params_big, k_noise2, "split layer-2 path (H=160)")

    print("KERNEL_OK")
</pallas_src>

<mosaic_0001>
module attributes {stable_mosaic.version = 11 : i64} {
  func.func @_encoder_zc_kernel(%arg0: i32, %arg1: memref<8x8xbf16, #tpu.memory_space<vmem>>, %arg2: memref<8x8xbf16, #tpu.memory_space<vmem>>, %arg3: memref<8x4xbf16, #tpu.memory_space<vmem>>, %arg4: memref<8x64xbf16, #tpu.memory_space<vmem>>, %arg5: memref<1x64xf32, #tpu.memory_space<vmem>>, %arg6: memref<64x16xbf16, #tpu.memory_space<vmem>>, %arg7: memref<1x16xf32, #tpu.memory_space<vmem>>, %arg8: memref<8x64xbf16, #tpu.memory_space<vmem>>, %arg9: memref<1x64xf32, #tpu.memory_space<vmem>>, %arg10: memref<64x8xbf16, #tpu.memory_space<vmem>>, %arg11: memref<1x8xf32, #tpu.memory_space<vmem>>, %arg12: memref<8x24xf32, #tpu.memory_space<vmem>>, %arg13: memref<8x12xf32, #tpu.memory_space<vmem>>) attributes {dimension_semantics = [#tpu.dimension_semantics<parallel>], iteration_bounds = array<i64: 1>, scalar_prefetch = 0 : i64, scratch_operands = 0 : i64, tpu.core_type = #tpu.core_type<tc>, window_params = [{transform_indices = @transform_0, window_bounds = array<i64: 8, 8>}, {transform_indices = @transform_1, window_bounds = array<i64: 8, 8>}, {transform_indices = @transform_2, window_bounds = array<i64: 8, 4>}, {pipeline_mode = #tpu.pipeline_mode<synchronous>, transform_indices = @transform_3, window_bounds = array<i64: 8, 64>}, {pipeline_mode = #tpu.pipeline_mode<synchronous>, transform_indices = @transform_4, window_bounds = array<i64: 1, 64>}, {pipeline_mode = #tpu.pipeline_mode<synchronous>, transform_indices = @transform_5, window_bounds = array<i64: 64, 16>}, {pipeline_mode = #tpu.pipeline_mode<synchronous>, transform_indices = @transform_6, window_bounds = array<i64: 1, 16>}, {pipeline_mode = #tpu.pipeline_mode<synchronous>, transform_indices = @transform_7, window_bounds = array<i64: 8, 64>}, {pipeline_mode = #tpu.pipeline_mode<synchronous>, transform_indices = @transform_8, window_bounds = array<i64: 1, 64>}, {pipeline_mode = #tpu.pipeline_mode<synchronous>, transform_indices = @transform_9, window_bounds = array<i64: 64, 8>}, {pipeline_mode = #tpu.pipeline_mode<synchronous>, transform_indices = @transform_10, window_bounds = array<i64: 1, 8>}, {transform_indices = @transform_11, window_bounds = array<i64: 8, 24>}, {transform_indices = @transform_12, window_bounds = array<i64: 8, 12>}]} {
    %c0 = arith.constant 0 : index
    %c0_0 = arith.constant 0 : index
    %0 = vector.load %arg1[%c0, %c0_0] : memref<8x8xbf16, #tpu.memory_space<vmem>>, vector<8x8xbf16>
    %c0_1 = arith.constant 0 : index
    %c0_2 = arith.constant 0 : index
    %1 = vector.load %arg4[%c0_1, %c0_2] : memref<8x64xbf16, #tpu.memory_space<vmem>>, vector<8x64xbf16>
    %cst = arith.constant dense<0.000000e+00> : vector<8x64xf32>
    %2 = tpu.matmul %0, %1, %cst {dimension_numbers = #tpu.dot_dimension_numbers<[1], [0], [0], [1], [0, 0, 1, 1], [], []>} : vector<8x8xbf16>, vector<8x64xbf16>, vector<8x64xf32> -> vector<8x64xf32>
    %c0_3 = arith.constant 0 : index
    %c0_4 = arith.constant 0 : index
    %3 = vector.load %arg5[%c0_3, %c0_4] : memref<1x64xf32, #tpu.memory_space<vmem>>, vector<1x64xf32>
    %4 = vector.broadcast %3 : vector<1x64xf32> to vector<8x64xf32>
    %5 = arith.addf %2, %4 : vector<8x64xf32>
    %6 = math.tanh %5 : vector<8x64xf32>
    %7 = arith.truncf %6 : vector<8x64xf32> to vector<8x64xbf16>
    %c0_5 = arith.constant 0 : index
    %c0_6 = arith.constant 0 : index
    %8 = vector.load %arg6[%c0_5, %c0_6] : memref<64x16xbf16, #tpu.memory_space<vmem>>, vector<64x16xbf16>
    %cst_7 = arith.constant dense<0.000000e+00> : vector<8x16xf32>
    %9 = tpu.matmul %7, %8, %cst_7 {dimension_numbers = #tpu.dot_dimension_numbers<[1], [0], [0], [1], [0, 0, 1, 1], [], []>} : vector<8x64xbf16>, vector<64x16xbf16>, vector<8x16xf32> -> vector<8x16xf32>
    %c0_8 = arith.constant 0 : index
    %c0_9 = arith.constant 0 : index
    %10 = vector.load %arg7[%c0_8, %c0_9] : memref<1x16xf32, #tpu.memory_space<vmem>>, vector<1x16xf32>
    %11 = vector.broadcast %10 : vector<1x16xf32> to vector<8x16xf32>
    %12 = arith.addf %9, %11 : vector<8x16xf32>
    %13 = vector.extract_strided_slice %12 {offsets = [0, 0], sizes = [8, 8], strides = [1, 1]} : vector<8x16xf32> to vector<8x8xf32>
    %14 = vector.extract_strided_slice %12 {offsets = [0, 8], sizes = [8, 8], strides = [1, 1]} : vector<8x16xf32> to vector<8x8xf32>
    %cst_10 = arith.constant 5.000000e-01 : f32
    %15 = vector.broadcast %cst_10 : f32 to vector<8x8xf32>
    %16 = arith.mulf %15, %14 : vector<8x8xf32>
    %17 = math.exp %16 : vector<8x8xf32>
    %c0_11 = arith.constant 0 : index
    %c0_12 = arith.constant 0 : index
    %18 = vector.load %arg2[%c0_11, %c0_12] : memref<8x8xbf16, #tpu.memory_space<vmem>>, vector<8x8xbf16>
    %19 = arith.extf %18 : vector<8x8xbf16> to vector<8x8xf32>
    %20 = arith.mulf %17, %19 : vector<8x8xf32>
    %21 = arith.addf %13, %20 : vector<8x8xf32>
    %22 = tpu.concatenate %13, %14, %21 in 1 : vector<8x8xf32>, vector<8x8xf32>, vector<8x8xf32> -> vector<8x24xf32>
    %c0_13 = arith.constant 0 : index
    %c0_14 = arith.constant 0 : index
    %23 = vector.load %arg12[%c0_13, %c0_14] : memref<8x24xf32, #tpu.memory_space<vmem>>, vector<8x24xf32>
    tpu.vector_store %arg12[%c0_13, %c0_14], %22 {strides = array<i32>} : memref<8x24xf32, #tpu.memory_space<vmem>>, vector<8x24xf32>,
    %24 = arith.truncf %13 : vector<8x8xf32> to vector<8x8xbf16>
    %c0_15 = arith.constant 0 : index
    %c0_16 = arith.constant 0 : index
    %25 = vector.load %arg8[%c0_15, %c0_16] : memref<8x64xbf16, #tpu.memory_space<vmem>>, vector<8x64xbf16>
    %cst_17 = arith.constant dense<0.000000e+00> : vector<8x64xf32>
    %26 = tpu.matmul %24, %25, %cst_17 {dimension_numbers = #tpu.dot_dimension_numbers<[1], [0], [0], [1], [0, 0, 1, 1], [], []>} : vector<8x8xbf16>, vector<8x64xbf16>, vector<8x64xf32> -> vector<8x64xf32>
    %c0_18 = arith.constant 0 : index
    %c0_19 = arith.constant 0 : index
    %27 = vector.load %arg9[%c0_18, %c0_19] : memref<1x64xf32, #tpu.memory_space<vmem>>, vector<1x64xf32>
    %28 = vector.broadcast %27 : vector<1x64xf32> to vector<8x64xf32>
    %29 = arith.addf %26, %28 : vector<8x64xf32>
    %30 = math.tanh %29 : vector<8x64xf32>
    %31 = arith.truncf %30 : vector<8x64xf32> to vector<8x64xbf16>
    %c0_20 = arith.constant 0 : index
    %c0_21 = arith.constant 0 : index
    %32 = vector.load %arg10[%c0_20, %c0_21] : memref<64x8xbf16, #tpu.memory_space<vmem>>, vector<64x8xbf16>
    %cst_22 = arith.constant dense<0.000000e+00> : vector<8x8xf32>
    %33 = tpu.matmul %31, %32, %cst_22 {dimension_numbers = #tpu.dot_dimension_numbers<[1], [0], [0], [1], [0, 0, 1, 1], [], []>} : vector<8x64xbf16>, vector<64x8xbf16>, vector<8x8xf32> -> vector<8x8xf32>
    %c0_23 = arith.constant 0 : index
    %c0_24 = arith.constant 0 : index
    %34 = vector.load %arg11[%c0_23, %c0_24] : memref<1x8xf32, #tpu.memory_space<vmem>>, vector<1x8xf32>
    %35 = vector.broadcast %34 : vector<1x8xf32> to vector<8x8xf32>
    %36 = arith.addf %33, %35 : vector<8x8xf32>
    %37 = vector.extract_strided_slice %36 {offsets = [0, 0], sizes = [8, 4], strides = [1, 1]} : vector<8x8xf32> to vector<8x4xf32>
    %38 = vector.extract_strided_slice %36 {offsets = [0, 4], sizes = [8, 4], strides = [1, 1]} : vector<8x8xf32> to vector<8x4xf32>
    %cst_25 = arith.constant 5.000000e-01 : f32
    %39 = vector.broadcast %cst_25 : f32 to vector<8x4xf32>
    %40 = arith.mulf %39, %38 : vector<8x4xf32>
    %41 = math.exp %40 : vector<8x4xf32>
    %c0_26 = arith.constant 0 : index
    %c0_27 = arith.constant 0 : index
    %42 = vector.load %arg3[%c0_26, %c0_27] : memref<8x4xbf16, #tpu.memory_space<vmem>>, vector<8x4xbf16>
    %43 = arith.extf %42 : vector<8x4xbf16> to vector<8x4xf32>
    %44 = arith.mulf %41, %43 : vector<8x4xf32>
    %45 = arith.addf %37, %44 : vector<8x4xf32>
    %46 = tpu.concatenate %37, %38, %45 in 1 : vector<8x4xf32>, vector<8x4xf32>, vector<8x4xf32> -> vector<8x12xf32>
    %c0_28 = arith.constant 0 : index
    %c0_29 = arith.constant 0 : index
    %47 = vector.load %arg13[%c0_28, %c0_29] : memref<8x12xf32, #tpu.memory_space<vmem>>, vector<8x12xf32>
    tpu.vector_store %arg13[%c0_28, %c0_29], %46 {strides = array<i32>} : memref<8x12xf32, #tpu.memory_space<vmem>>, vector<8x12xf32>,
    return
  }
  func.func @transform_0(%arg0: i32) -> (i32, i32) {
    %c0_i32 = arith.constant 0 : i32
    %c0_i32_0 = arith.constant 0 : i32
    return %arg0, %c0_i32 : i32, i32
  }
  func.func @transform_1(%arg0: i32) -> (i32, i32) {
    %c0_i32 = arith.constant 0 : i32
    %c0_i32_0 = arith.constant 0 : i32
    return %arg0, %c0_i32 : i32, i32
  }
  func.func @transform_2(%arg0: i32) -> (i32, i32) {
    %c0_i32 = arith.constant 0 : i32
    %c0_i32_0 = arith.constant 0 : i32
    return %arg0, %c0_i32 : i32, i32
  }
  func.func @transform_3(%arg0: i32) -> (i32, i32) {
    %c0_i32 = arith.constant 0 : i32
    %c0_i32_0 = arith.constant 0 : i32
    %c0_i32_1 = arith.constant 0 : i32
    return %c0_i32, %c0_i32_0 : i32, i32
  }
  func.func @transform_4(%arg0: i32) -> (i32, i32) {
    %c0_i32 = arith.constant 0 : i32
    %c0_i32_0 = arith.constant 0 : i32
    %c0_i32_1 = arith.constant 0 : i32
    return %c0_i32, %c0_i32_0 : i32, i32
  }
  func.func @transform_5(%arg0: i32) -> (i32, i32) {
    %c0_i32 = arith.constant 0 : i32
    %c0_i32_0 = arith.constant 0 : i32
    %c0_i32_1 = arith.constant 0 : i32
    return %c0_i32, %c0_i32_0 : i32, i32
  }
  func.func @transform_6(%arg0: i32) -> (i32, i32) {
    %c0_i32 = arith.constant 0 : i32
    %c0_i32_0 = arith.constant 0 : i32
    %c0_i32_1 = arith.constant 0 : i32
    return %c0_i32, %c0_i32_0 : i32, i32
  }
  func.func @transform_7(%arg0: i32) -> (i32, i32) {
    %c0_i32 = arith.constant 0 : i32
    %c0_i32_0 = arith.constant 0 : i32
    %c0_i32_1 = arith.constant 0 : i32
    return %c0_i32, %c0_i32_0 : i32, i32
  }
  func.func @transform_8(%arg0: i32) -> (i32, i32) {
    %c0_i32 = arith.constant 0 : i32
    %c0_i32_0 = arith.constant 0 : i32
    %c0_i32_1 = arith.constant 0 : i32
    return %c0_i32, %c0_i32_0 : i32, i32
  }
  func.func @transform_9(%arg0: i32) -> (i32, i32) {
    %c0_i32 = arith.constant 0 : i32
    %c0_i32_0 = arith.constant 0 : i32
    %c0_i32_1 = arith.constant 0 : i32
    return %c0_i32, %c0_i32_0 : i32, i32
  }
  func.func @transform_10(%arg0: i32) -> (i32, i32) {
    %c0_i32 = arith.constant 0 : i32
    %c0_i32_0 = arith.constant 0 : i32
    %c0_i32_1 = arith.constant 0 : i32
    return %c0_i32, %c0_i32_0 : i32, i32
  }
  func.func @transform_11(%arg0: i32) -> (i32, i32) {
    %c0_i32 = arith.constant 0 : i32
    %c0_i32_0 = arith.constant 0 : i32
    return %arg0, %c0_i32 : i32, i32
  }
  func.func @transform_12(%arg0: i32) -> (i32, i32) {
    %c0_i32 = arith.constant 0 : i32
    %c0_i32_0 = arith.constant 0 : i32
    return %arg0, %c0_i32 : i32, i32
  }
}

</mosaic_0001>

<llo_original>
// kernel: tpu_custom_call.1
$region0: #{tpu_custom_call.1}
  #allocation0 [shape = 'u32[]', space=smem, size = 0x4, offset = 0x4, fixed_abs, tag = 'smem constant byte address 0x4 - core index']
  #allocation1 [shape = 'u32[144,128]{1,0:T(1,128)}', space=vmem, size = 0x12000, scoped, tag = 'internal scratch']
  %s0 = inlined_call_operand.vmem [shape: bf16[8,8], index: 0, kind: input, shape index: {}]
  %s1 = inlined_call_operand.vmem [shape: bf16[8,8], index: 1, kind: input, shape index: {}]
  %s2 = inlined_call_operand.vmem [shape: bf16[8,4], index: 2, kind: input, shape index: {}]
  %s3 = inlined_call_operand.vmem [shape: bf16[8,64], index: 3, kind: input, shape index: {}]
  %s4 = inlined_call_operand.vmem [shape: f32[1,64], index: 4, kind: input, shape index: {}]
  %s5 = inlined_call_operand.vmem [shape: bf16[64,16], index: 5, kind: input, shape index: {}]
  %s6 = inlined_call_operand.vmem [shape: f32[1,16], index: 6, kind: input, shape index: {}]
  %s7 = inlined_call_operand.vmem [shape: bf16[8,64], index: 7, kind: input, shape index: {}]
  %s8 = inlined_call_operand.vmem [shape: f32[1,64], index: 8, kind: input, shape index: {}]
  %s9 = inlined_call_operand.vmem [shape: bf16[64,8], index: 9, kind: input, shape index: {}]
  %s10 = inlined_call_operand.vmem [shape: f32[1,8], index: 10, kind: input, shape index: {}]
  %s11 = inlined_call_operand.hbm [shape: f32[8,24], index: 11, kind: output, shape index: {0}]
  %s12 = inlined_call_operand.hbm [shape: f32[8,12], index: 12, kind: output, shape index: {1}]
  %13 = xla_tuple %s11, %s12
  %s14 = sld [smem:[#allocation0]]
  $region62: #{tpu_custom_call.1} parent=0
    _
  %s16 = ssub.s32 1, %s14
  %s17 = scalar_select 0, %s16, %s14
  $region1: #{tpu_custom_call.1} parent=0
    #allocation2 [shape = 'u8[4096]{0}', space=vmem, size = 0x1000, scoped, tag = 'output window, operand 0, single buffered']
    #allocation3 [shape = 's32[1]{0}', space=sflag, size = 0x4, scoped, tag = 'scoped memory for tpu_custom_call.1']
    #allocation4 [shape = 'u8[4096]{0}', space=vmem, size = 0x1000, scoped, tag = 'output window, operand 1, single buffered']
    #allocation5 [shape = 's32[1]{0}', space=sflag, size = 0x4, scoped, tag = 'scoped memory for tpu_custom_call.1']
    %18 = vsyncpa [#allocation3], 0
    %19 = vsyncpa [#allocation5], 0
    // Predicated region
    $region2: #{tpu_custom_call.1} parent=1 // pred_check
      _
    $region3: #{tpu_custom_call.1} parent=1 // pred_check_branch
      %21 = sbr.rel (0) target = $region5
    $region4: #{tpu_custom_call.1} parent=1 // pred_region
      _
    $region5: #{tpu_custom_call.1} parent=1 // pred_fallthru
      _
    // Predicated region
    $region6: #{tpu_custom_call.1} parent=1 // pred_check
      _
    $region7: #{tpu_custom_call.1} parent=1 // pred_check_branch
      %23 = sbr.rel (0) target = $region9
    $region8: #{tpu_custom_call.1} parent=1 // pred_region
      _
    $region9: #{tpu_custom_call.1} parent=1 // pred_fallthru
      _
    // Predicated region
    $region10: #{tpu_custom_call.1} parent=1 // pred_check
      _
    $region11: #{tpu_custom_call.1} parent=1 // pred_check_branch
      %25 = sbr.rel (0) target = $region13
    $region12: #{tpu_custom_call.1} parent=1 // pred_region
      _
    $region13: #{tpu_custom_call.1} parent=1 // pred_fallthru
      _
    // Predicated region
    $region14: #{tpu_custom_call.1} parent=1 // pred_check
      _
    $region15: #{tpu_custom_call.1} parent=1 // pred_check_branch
      %27 = sbr.rel (0) target = $region17
    $region16: #{tpu_custom_call.1} parent=1 // pred_region
      _
    $region17: #{tpu_custom_call.1} parent=1 // pred_fallthru
      _
    // Predicated region
    $region18: #{tpu_custom_call.1} parent=1 // pred_check
      _
    $region19: #{tpu_custom_call.1} parent=1 // pred_check_branch
      %29 = sbr.rel (0) target = $region21
    $region20: #{tpu_custom_call.1} parent=1 // pred_region
      _
    $region21: #{tpu_custom_call.1} parent=1 // pred_fallthru
      _
    // Predicated region
    $region22: #{tpu_custom_call.1} parent=1 // pred_check
      _
    $region23: #{tpu_custom_call.1} parent=1 // pred_check_branch
      %31 = sbr.rel (0) target = $region25
    $region24: #{tpu_custom_call.1} parent=1 // pred_region
      _
    $region25: #{tpu_custom_call.1} parent=1 // pred_fallthru
      _
    // Predicated region
    $region26: #{tpu_custom_call.1} parent=1 // pred_check
      _
    $region27: #{tpu_custom_call.1} parent=1 // pred_check_branch
      %33 = sbr.rel (0) target = $region29
    $region28: #{tpu_custom_call.1} parent=1 // pred_region
      _
    $region29: #{tpu_custom_call.1} parent=1 // pred_fallthru
      _
    // Predicated region
    $region30: #{tpu_custom_call.1} parent=1 // pred_check
      _
    $region31: #{tpu_custom_call.1} parent=1 // pred_check_branch
      %35 = sbr.rel (0) target = $region33
    $region32: #{tpu_custom_call.1} parent=1 // pred_region
      _
    $region33: #{tpu_custom_call.1} parent=1 // pred_fallthru
      _
    // Predicated region
    $region34: #{tpu_custom_call.1} parent=1 // pred_check
      _
    $region35: #{tpu_custom_call.1} parent=1 // pred_check_branch
      %37 = sbr.rel (0) target = $region37
    $region36: #{tpu_custom_call.1} parent=1 // pred_region
      _
    $region37: #{tpu_custom_call.1} parent=1 // pred_fallthru
      _
    // Predicated region
    $region38: #{tpu_custom_call.1} parent=1 // pred_check
      _
    $region39: #{tpu_custom_call.1} parent=1 // pred_check_branch
      %39 = sbr.rel (0) target = $region41
    $region40: #{tpu_custom_call.1} parent=1 // pred_region
      _
    $region41: #{tpu_custom_call.1} parent=1 // pred_fallthru
      _
    // Predicated region
    $region42: #{tpu_custom_call.1} parent=1 // pred_check
      _
    $region43: #{tpu_custom_call.1} parent=1 // pred_check_branch
      %41 = sbr.rel (0) target = $region45
    $region44: #{tpu_custom_call.1} parent=1 // pred_region
      _
    $region45: #{tpu_custom_call.1} parent=1 // pred_fallthru
      _
    %v43 = vld [vmem:[%s0] sm:$0xf]
    %v44 = vld [vmem:[%s3] sm:$0xf]
    %v45 = vld [vmem:[%s4] sm:$0x1]
    %v47 = vlaneseq
    %v48 = vshrl.u32 %v47, 7
    %v49 = vsub.s32 0, %v48
    %v50 = vrot.slane %v45, %v49
    %vm52 = vcmask 64512
    %v54 = vsel %vm52, %v43, 0
    %vm56 = vcmask 1043456
    %v58 = vsel %vm56, %v44, 0
    %60 = vmatprep.subr.bf16.mxu0 0
    %61 = vmatpush1.bf16.msra.mxu0 0
    %62 = vmatprep.subr.bf16.mxu0 0
    %63 = vmatpush1.bf16.msra.mxu0 0
    %64 = vmatprep.subr.bf16.mxu0 0
    %65 = vmatpush1.bf16.msra.mxu0 0
    %66 = vmatprep.subr.bf16.mxu0 0
    %67 = vmatpush1.bf16.msra.mxu0 0
    %68 = vmatprep.subr.bf16.mxu0 0
    %69 = vmatpush1.bf16.msra.mxu0 0
    %70 = vmatprep.subr.bf16.mxu0 0
    %71 = vmatpush1.bf16.msra.mxu0 0
    %72 = vmatprep.subr.bf16.mxu0 0
    %73 = vmatpush1.bf16.msra.mxu0 0
    %74 = vmatprep.subr.bf16.mxu0 0
    %75 = vmatpush1.bf16.msra.mxu0 %v58
    %76 = vmatprep.subr.bf16.mxu0 0
    %77 = vmatpush2.bf16.msra.mxu0 0
    %78 = vmatprep.subr.bf16.mxu0 0
    %79 = vmatpush2.bf16.msra.mxu0 0
    %80 = vmatprep.subr.bf16.mxu0 0
    %81 = vmatpush2.bf16.msra.mxu0 0
    %82 = vmatprep.subr.bf16.mxu0 0
    %83 = vmatpush2.bf16.msra.mxu0 0
    %84 = vmatprep.subr.bf16.mxu0 0
    %85 = vmatpush2.bf16.msra.mxu0 0
    %86 = vmatprep.subr.bf16.mxu0 0
    %87 = vmatpush2.bf16.msra.mxu0 0
    %88 = vmatprep.subr.bf16.mxu0 0
    %89 = vmatpush2.bf16.msra.mxu0 0
    %90 = vmatprep.subr.bf16.mxu0 0
    %91 = vmatpush2.bf16.msra.mxu0 0
    %92 = vmatprep.mubr.bf16.mxu0 0
    %93 = vmatmul.mubr.bf16.gmra.mxu0 %v54
    %v94 = vpop.f32.mrf.mxu0
    %v95 = vadd.f32 %v50, %v94
    %v96 = vpop.f32.mrf.mxu0
    %v97 = vpop.f32.mrf.mxu0
    %v98 = vpop.f32.mrf.mxu0
    %99 = vdwg.mxu0
    %v100 = vtanh.pop %v95
    %v101 = vpack.c.bf16 %v100, %v100
    %v102 = vld [vmem:[%s5] sm:$0xf]
    %v103 = vld [vmem:[%s5 + $0x4] sm:$0xf]
    %v104 = vld [vmem:[%s5 + $0x8] sm:$0xf]
    %v105 = vld [vmem:[%s5 + $0xc] sm:$0xf]
    %v106 = vld [vmem:[%s5 + $0x10] sm:$0xf]
    %v107 = vld [vmem:[%s5 + $0x14] sm:$0xf]
    %v108 = vld [vmem:[%s5 + $0x18] sm:$0xf]
    %v109 = vld [vmem:[%s5 + $0x1c] sm:$0xf]
    %v110 = vld [vmem:[%s6] sm:$0x1]
    %v112 = vlaneseq
    %v113 = vshrl.u32 %v112, 7
    %v114 = vsub.s32 0, %v113
    %v115 = vrot.slane %v110, %v114
    %v125 = vunpack.c.l.b16 %v102
    %v126 = vunpack.c.l.b16 %v103
    %v127 = vunpack.c.l.b16 %v104
    %v128 = vunpack.c.l.b16 %v105
    %v129 = vunpack.c.l.b16 %v106
    %v130 = vunpack.c.l.b16 %v107
    %v131 = vunpack.c.l.b16 %v108
    %v132 = vunpack.c.l.b16 %v109
    %v133 = vpack.c.b16 %v126, %v125
    %v134 = vpack.c.b16 %v128, %v127
    %v135 = vpack.c.b16 %v130, %v129
    %v136 = vpack.c.b16 %v132, %v131
    %vm141 = vcmask 523264
    %v143 = vsel %vm141, %v101, 0
    %145 = vmatprep.subr.bf16.mxu0 0
    %146 = vmatpush1.bf16.msra.mxu0 0
    %147 = vmatprep.subr.bf16.mxu0 0
    %148 = vmatpush1.bf16.msra.mxu0 0
    %149 = vmatprep.subr.bf16.mxu0 0
    %150 = vmatpush1.bf16.msra.mxu0 0
    %151 = vmatprep.subr.bf16.mxu0 0
    %152 = vmatpush1.bf16.msra.mxu0 0
    %153 = vmatprep.subr.bf16.mxu0 0
    %154 = vmatpush1.bf16.msra.mxu0 %v136
    %155 = vmatprep.subr.bf16.mxu0 0
    %156 = vmatpush1.bf16.msra.mxu0 %v135
    %157 = vmatprep.subr.bf16.mxu0 0
    %158 = vmatpush1.bf16.msra.mxu0 %v134
    %159 = vmatprep.subr.bf16.mxu0 0
    %160 = vmatpush1.bf16.msra.mxu0 %v133
    %161 = vmatprep.subr.bf16.mxu0 0
    %162 = vmatpush2.bf16.msra.mxu0 0
    %163 = vmatprep.subr.bf16.mxu0 0
    %164 = vmatpush2.bf16.msra.mxu0 0
    %165 = vmatprep.subr.bf16.mxu0 0
    %166 = vmatpush2.bf16.msra.mxu0 0
    %167 = vmatprep.subr.bf16.mxu0 0
    %168 = vmatpush2.bf16.msra.mxu0 0
    %169 = vmatprep.subr.bf16.mxu0 0
    %170 = vmatpush2.bf16.msra.mxu0 0
    %171 = vmatprep.subr.bf16.mxu0 0
    %172 = vmatpush2.bf16.msra.mxu0 0
    %173 = vmatprep.subr.bf16.mxu0 0
    %174 = vmatpush2.bf16.msra.mxu0 0
    %175 = vmatprep.subr.bf16.mxu0 0
    %176 = vmatpush2.bf16.msra.mxu0 0
    %177 = vmatprep.mubr.bf16.mxu0 0
    %178 = vmatmul.mubr.bf16.gmra.mxu0 %v143
    %v179 = vpop.f32.mrf.mxu0
    %v180 = vadd.f32 %v115, %v179
    %v181 = vpop.f32.mrf.mxu0
    %v182 = vpop.f32.mrf.mxu0
    %v183 = vpop.f32.mrf.mxu0
    %184 = vdwg.mxu0
    %v185 = vmul.f32 %v180, 0.5
    %v186 = vmul.f32 %v185, 1.442695
    %v187 = vpow.pop %v186
    %v188 = vld [vmem:[%s1] sm:$0xf]
    %v189 = vunpack.c.l.bf16 %v188
    %191 = vrot.lane.b32.xlu0 %v189, 8
    %v192 = vpop.permute.xlu0 %191
    %v194 = vmul.f32 %v187, %v192
    %196 = vrot.lane.b32.xlu0 %v194, 120
    %v197 = vpop.permute.xlu0 %196
    %v199 = vadd.f32 %v180, %v197
    %201 = vrot.lane.b32.xlu0 %v199, 16
    %v202 = vpop.permute.xlu0 %201
    %vm204 = vcmask 130048
    %v205 = vsel %vm204, %v180, %v202
    %vm206 = vcmask 195584
    %207 = vst.msk [vmem:[#allocation2] sm:$0xff] %vm206, %v205
    %v208 = vpack.c.bf16 %v180, %v180
    %v209 = vld [vmem:[%s7] sm:$0xf]
    %v210 = vld [vmem:[%s8] sm:$0x1]
    %v212 = vlaneseq
    %v213 = vshrl.u32 %v212, 7
    %v214 = vsub.s32 0, %v213
    %v215 = vrot.slane %v210, %v214
    %v218 = vsel %vm52, %v208, 0
    %v221 = vsel %vm56, %v209, 0
    %223 = vmatprep.subr.bf16.mxu0 0
    %224 = vmatpush1.bf16.msra.mxu0 0
    %225 = vmatprep.subr.bf16.mxu0 0
    %226 = vmatpush1.bf16.msra.mxu0 0
    %227 = vmatprep.subr.bf16.mxu0 0
    %228 = vmatpush1.bf16.msra.mxu0 0
    %229 = vmatprep.subr.bf16.mxu0 0
    %230 = vmatpush1.bf16.msra.mxu0 0
    %231 = vmatprep.subr.bf16.mxu0 0
    %232 = vmatpush1.bf16.msra.mxu0 0
    %233 = vmatprep.subr.bf16.mxu0 0
    %234 = vmatpush1.bf16.msra.mxu0 0
    %235 = vmatprep.subr.bf16.mxu0 0
    %236 = vmatpush1.bf16.msra.mxu0 0
    %237 = vmatprep.subr.bf16.mxu0 0
    %238 = vmatpush1.bf16.msra.mxu0 %v221
    %239 = vmatprep.subr.bf16.mxu0 0
    %240 = vmatpush2.bf16.msra.mxu0 0
    %241 = vmatprep.subr.bf16.mxu0 0
    %242 = vmatpush2.bf16.msra.mxu0 0
    %243 = vmatprep.subr.bf16.mxu0 0
    %244 = vmatpush2.bf16.msra.mxu0 0
    %245 = vmatprep.subr.bf16.mxu0 0
    %246 = vmatpush2.bf16.msra.mxu0 0
    %247 = vmatprep.subr.bf16.mxu0 0
    %248 = vmatpush2.bf16.msra.mxu0 0
    %249 = vmatprep.subr.bf16.mxu0 0
    %250 = vmatpush2.bf16.msra.mxu0 0
    %251 = vmatprep.subr.bf16.mxu0 0
    %252 = vmatpush2.bf16.msra.mxu0 0
    %253 = vmatprep.subr.bf16.mxu0 0
    %254 = vmatpush2.bf16.msra.mxu0 0
    %255 = vmatprep.mubr.bf16.mxu0 0
    %256 = vmatmul.mubr.bf16.gmra.mxu0 %v218
    %v257 = vpop.f32.mrf.mxu0
    %v258 = vadd.f32 %v215, %v257
    %v259 = vpop.f32.mrf.mxu0
    %v260 = vpop.f32.mrf.mxu0
    %v261 = vpop.f32.mrf.mxu0
    %262 = vdwg.mxu0
    %v263 = vtanh.pop %v258
    %v264 = vpack.c.bf16 %v263, %v263
    %v265 = vld [vmem:[%s9] sm:$0xf]
    %v266 = vld [vmem:[%s9 + $0x4] sm:$0xf]
    %v267 = vld [vmem:[%s9 + $0x8] sm:$0xf]
    %v268 = vld [vmem:[%s9 + $0xc] sm:$0xf]
    %v269 = vld [vmem:[%s9 + $0x10] sm:$0xf]
    %v270 = vld [vmem:[%s9 + $0x14] sm:$0xf]
    %v271 = vld [vmem:[%s9 + $0x18] sm:$0xf]
    %v272 = vld [vmem:[%s9 + $0x1c] sm:$0xf]
    %v273 = vld [vmem:[%s10] sm:$0x1]
    %v275 = vlaneseq
    %v276 = vshrl.u32 %v275, 7
    %v277 = vsub.s32 0, %v276
    %v278 = vrot.slane %v273, %v277
    %v288 = vunpack.c.l.b16 %v265
    %v289 = vunpack.c.l.b16 %v266
    %v290 = vunpack.c.l.b16 %v267
    %v291 = vunpack.c.l.b16 %v268
    %v292 = vunpack.c.l.b16 %v269
    %v293 = vunpack.c.l.b16 %v270
    %v294 = vunpack.c.l.b16 %v271
    %v295 = vunpack.c.l.b16 %v272
    %v296 = vpack.c.b16 %v289, %v288
    %v297 = vpack.c.b16 %v291, %v290
    %v298 = vpack.c.b16 %v293, %v292
    %v299 = vpack.c.b16 %v295, %v294
    %v305 = vsel %vm141, %v264, 0
    %307 = vmatprep.subr.bf16.mxu0 0
    %308 = vmatpush1.bf16.msra.mxu0 0
    %309 = vmatprep.subr.bf16.mxu0 0
    %310 = vmatpush1.bf16.msra.mxu0 0
    %311 = vmatprep.subr.bf16.mxu0 0
    %312 = vmatpush1.bf16.msra.mxu0 0
    %313 = vmatprep.subr.bf16.mxu0 0
    %314 = vmatpush1.bf16.msra.mxu0 0
    %315 = vmatprep.subr.bf16.mxu0 0
    %316 = vmatpush1.bf16.msra.mxu0 %v299
    %317 = vmatprep.subr.bf16.mxu0 0
    %318 = vmatpush1.bf16.msra.mxu0 %v298
    %319 = vmatprep.subr.bf16.mxu0 0
    %320 = vmatpush1.bf16.msra.mxu0 %v297
    %321 = vmatprep.subr.bf16.mxu0 0
    %322 = vmatpush1.bf16.msra.mxu0 %v296
    %323 = vmatprep.subr.bf16.mxu0 0
    %324 = vmatpush2.bf16.msra.mxu0 0
    %325 = vmatprep.subr.bf16.mxu0 0
    %326 = vmatpush2.bf16.msra.mxu0 0
    %327 = vmatprep.subr.bf16.mxu0 0
    %328 = vmatpush2.bf16.msra.mxu0 0
    %329 = vmatprep.subr.bf16.mxu0 0
    %330 = vmatpush2.bf16.msra.mxu0 0
    %331 = vmatprep.subr.bf16.mxu0 0
    %332 = vmatpush2.bf16.msra.mxu0 0
    %333 = vmatprep.subr.bf16.mxu0 0
    %334 = vmatpush2.bf16.msra.mxu0 0
    %335 = vmatprep.subr.bf16.mxu0 0
    %336 = vmatpush2.bf16.msra.mxu0 0
    %337 = vmatprep.subr.bf16.mxu0 0
    %338 = vmatpush2.bf16.msra.mxu0 0
    %339 = vmatprep.mubr.bf16.mxu0 0
    %340 = vmatmul.mubr.bf16.gmra.mxu0 %v305
    %v341 = vpop.f32.mrf.mxu0
    %v342 = vadd.f32 %v278, %v341
    %v343 = vpop.f32.mrf.mxu0
    %v344 = vpop.f32.mrf.mxu0
    %v345 = vpop.f32.mrf.mxu0
    %346 = vdwg.mxu0
    %v347 = vmul.f32 %v342, 0.5
    %v348 = vmul.f32 %v347, 1.442695
    %v349 = vpow.pop %v348
    %v350 = vld [vmem:[%s2] sm:$0xf]
    %v351 = vunpack.c.l.bf16 %v350
    %353 = vrot.lane.b32.xlu0 %v351, 4
    %v354 = vpop.permute.xlu0 %353
    %v356 = vmul.f32 %v349, %v354
    %358 = vrot.lane.b32.xlu0 %v356, 124
    %v359 = vpop.permute.xlu0 %358
    %v361 = vadd.f32 %v342, %v359
    %363 = vrot.lane.b32.xlu0 %v361, 8
    %v364 = vpop.permute.xlu0 %363
    %v366 = vsel %vm52, %v342, %v364
    %vm367 = vcmask 97280
    %368 = vst.msk [vmem:[#allocation4] sm:$0xff] %vm367, %v366
    // Predicated region
    $region46: #{tpu_custom_call.1} parent=1 // pred_check
      _
    $region47: #{tpu_custom_call.1} parent=1 // pred_check_branch
      %370 = sbr.rel (0) target = $region49
    $region48: #{tpu_custom_call.1} parent=1 // pred_region
      %s372 = ssub.s32 128, 128
      %373 = vsyncadd [#allocation3], %s372
      %s375 = sshll.u32 [#allocation2], 4
      %s376 = int_to_ptr.vmem [resolvable:$true] %s375
      %378 = dma.vmem_to_hbm [thread:$0]  %s376, 128, %s11, [#allocation3]
    $region49: #{tpu_custom_call.1} parent=1 // pred_fallthru
      _
    // Predicated region
    $region50: #{tpu_custom_call.1} parent=1 // pred_check
      _
    $region51: #{tpu_custom_call.1} parent=1 // pred_check_branch
      %380 = sbr.rel (0) target = $region53
    $region52: #{tpu_custom_call.1} parent=1 // pred_region
      %s382 = ssub.s32 128, 128
      %383 = vsyncadd [#allocation5], %s382
      %s385 = sshll.u32 [#allocation4], 4
      %s386 = int_to_ptr.vmem [resolvable:$true] %s385
      %388 = dma.vmem_to_hbm [thread:$0]  %s386, 128, %s12, [#allocation5]
    $region53: #{tpu_custom_call.1} parent=1 // pred_fallthru
      _
    // Predicated region
    $region54: #{tpu_custom_call.1} parent=1 // pred_check
      _
    $region55: #{tpu_custom_call.1} parent=1 // pred_check_branch
      %390 = sbr.rel (0) target = $region57
    $region56: #{tpu_custom_call.1} parent=1 // pred_region
      %391 = dma.done [#allocation3], 128
    $region57: #{tpu_custom_call.1} parent=1 // pred_fallthru
      _
    // Predicated region
    $region58: #{tpu_custom_call.1} parent=1 // pred_check
      _
    $region59: #{tpu_custom_call.1} parent=1 // pred_check_branch
      %393 = sbr.rel (0) target = $region61
    $region60: #{tpu_custom_call.1} parent=1 // pred_region
      %394 = dma.done [#allocation5], 128
    $region61: #{tpu_custom_call.1} parent=1 // pred_fallthru
      _
    %395 = vsyncpa [#allocation3], 1
    %396 = vsyncpa [#allocation5], 1

</llo_original>
